<compile_context>
chip_gen: v7x
topology: tpu7x:2x2x1
jax: 0.10.0
libtpu: 0.0.40
codegen_flags: <defaults>
</compile_context>

<pallas_src>
from functools import partial

import numpy as np
import jax
import jax.numpy as jnp
from jax.experimental import pallas as pl
from jax.experimental.pallas import tpu as pltpu


# ----------------------------------------------------------------------------
# Bicubic interpolation weights (torch F.interpolate mode='bicubic',
# align_corners=False, antialias=False; A = -0.75), with the crop window folded
# into a full-size (out_size, full_size) matrix.
# ----------------------------------------------------------------------------
def _cubic_weights(t, A=-0.75):
    def cc1(x):  # |x| <= 1
        return ((A + 2.0) * x - (A + 3.0)) * x * x + 1.0

    def cc2(x):  # 1 < |x| < 2
        return ((A * x - 5.0 * A) * x + 8.0 * A) * x - 4.0 * A

    return np.array([cc2(t + 1.0), cc1(t), cc1(1.0 - t), cc2(2.0 - t)],
                    dtype=np.float64)


def bicubic_matrix_full(crop_size, out_size, full_size, offset, dtype=np.float32):
    """(out_size, full_size) M so that M @ x_full == bicubic_resize(x_full[offset:offset+crop_size])."""
    scale = crop_size / out_size
    M = np.zeros((out_size, full_size), dtype=np.float64)
    for i in range(out_size):
        src = (i + 0.5) * scale - 0.5
        fi = int(np.floor(src))
        t = src - fi
        ws = _cubic_weights(t)
        for k in range(4):
            idx = min(max(fi - 1 + k, 0), crop_size - 1) + offset  # clamp inside crop
            M[i, idx] += ws[k]
    return M.astype(dtype)


# ----------------------------------------------------------------------------
# VMEM budgeting / plane-block (tp) selection.
# ----------------------------------------------------------------------------
def _vmem_capacity_bytes():
    try:
        return int(pltpu.get_tpu_info().vmem_capacity_bytes)
    except Exception:
        return 64 * 1024 * 1024  # conservative fallback (v7x per-core VMEM)


def _pick_tp(P, H, W, in_itemsize, out_itemsize, vmem_budget):
    """Largest divisor tp of P (capped at P//2 when P > 1, so the 'parallel' grid has
    >= 2 steps for v7x's two TensorCores) whose live VMEM set fits the budget."""
    cap = P // 2 if P > 1 else 1
    best = 1
    for tp in range(1, cap + 1):
        if P % tp != 0:
            continue
        phw = tp * H * W
        live = (2 * phw * in_itemsize            # input block, double-buffered
                + 2 * phw * out_itemsize         # output block, double-buffered
                + 2 * (H * H + W * W) * 2        # bf16 weight blocks, double-buffered
                + phw * (2 + 4 + 2 + 4)          # in-kernel: bf16 x, f32 t, bf16 t, f32 y
                + tp * (H * H + W * W) * 2)      # broadcast bf16 weight copies
        if live <= vmem_budget:
            best = tp
    # TODO(synk): if even tp=1 exceeds the budget (gigantic single plane), a spatial
    # tiling of H/W would be needed; not required for typical watermarking image sizes.
    return best


# ----------------------------------------------------------------------------
# Pallas kernel: two batched bf16 MXU matmuls per plane block.
#   x_ref:   (tp, H, W)  image planes
#   wh_ref:  (H, H)      height-resize matrix (crop folded in)
#   wwt_ref: (W, W)      Ww^T width-resize matrix (crop folded in)
#   out_ref: (tp, H, W)
# ----------------------------------------------------------------------------
def _resize_kernel(x_ref, wh_ref, wwt_ref, out_ref):
    tp, H, W = x_ref.shape
    x = x_ref[...].astype(jnp.bfloat16)                               # (tp, H, W)
    # Width resize: t[p,h,j] = sum_v x[p,h,v] * wwt[v,j]
    wwt_b = jnp.broadcast_to(wwt_ref[...], (tp, W, W))
    t = jnp.einsum('phv,pvw->phw', x, wwt_b,
                   preferred_element_type=jnp.float32)                # (tp, H, W) f32
    t = t.astype(jnp.bfloat16)
    # Height resize: y[p,i,j] = sum_k wh[i,k] * t[p,k,j]
    wh_b = jnp.broadcast_to(wh_ref[...], (tp, H, H))
    y = jnp.einsum('pik,pkw->piw', wh_b, t,
                   preferred_element_type=jnp.float32)                # (tp, H, W) f32
    # TODO(synk): integer image dtypes would need round+clamp here (bicubic overshoots);
    # torch bicubic requires float input anyway.
    out_ref[...] = y.astype(out_ref.dtype)


@partial(jax.jit, static_argnames=("tp", "vmem_limit"))
def _crop_resize_device(image, wh, wwt, *, tp, vmem_limit):
    N, C, H, W = image.shape
    P = N * C
    x3 = image.reshape(P, H, W)                  # free reshape (merge leading dims)
    itemsize = image.dtype.itemsize
    flops = 2 * P * H * W * (H + W)
    bytes_accessed = 2 * P * H * W * itemsize + (H * H + W * W) * 2

    out3 = pl.pallas_call(
        _resize_kernel,
        out_shape=jax.ShapeDtypeStruct((P, H, W), image.dtype),
        grid_spec=pltpu.PrefetchScalarGridSpec(
            num_scalar_prefetch=0,
            grid=(P // tp,),
            in_specs=[
                pl.BlockSpec((tp, H, W), lambda i: (i, 0, 0)),
                pl.BlockSpec((H, H), lambda i: (0, 0)),
                pl.BlockSpec((W, W), lambda i: (0, 0)),
            ],
            out_specs=pl.BlockSpec((tp, H, W), lambda i: (i, 0, 0)),
        ),
        compiler_params=pltpu.CompilerParams(
            dimension_semantics=("parallel",),
            vmem_limit_bytes=vmem_limit,
        ),
        cost_estimate=pl.CostEstimate(
            flops=flops, transcendentals=0, bytes_accessed=bytes_accessed),
    )(x3, wh, wwt)
    return out3.reshape(N, C, H, W)


# ----------------------------------------------------------------------------
# Module-equivalent wrapper (random crop geometry stays host-side, as in torch).
# ----------------------------------------------------------------------------
def get_random_rectangle_inside(image_shape, height_ratio, width_ratio,
                                remain_h=None, remain_w=None):
    image_height = image_shape[2]
    image_width = image_shape[3]
    remaining_height = int(height_ratio * image_height) if remain_h is None else int(remain_h)
    remaining_width = int(width_ratio * image_width) if remain_w is None else int(remain_w)
    if remaining_height == image_height:
        height_start = 0
    else:
        height_start = np.random.randint(0, image_height - remaining_height)
    if remaining_width == image_width:
        width_start = 0
    else:
        width_start = np.random.randint(0, image_width - remaining_width)
    return (height_start, height_start + remaining_height,
            width_start, width_start + remaining_width)


class CropResize:
    def __init__(self, lowerbound=0.4, upperbound=0.9):
        self.ratio = [lowerbound, upperbound]
        self.last_rect = None

    def __call__(self, image_and_cover):
        image, cover_image = image_and_cover  # cover_image unused (as in reference)
        N, C, H, W = image.shape
        ratio = np.random.uniform(self.ratio[0], self.ratio[1])
        h_start, h_end, w_start, w_end = get_random_rectangle_inside(
            image.shape, ratio, ratio)
        self.last_rect = (h_start, h_end, w_start, w_end)
        ch, cw = h_end - h_start, w_end - w_start

        # Generation-aware VMEM budget: <= 48 MiB on v7x (64 MiB VMEM), 64 MiB on
        # v5e/v6e (128 MiB VMEM); tp chosen so the full live set fits 80% of it.
        capacity = _vmem_capacity_bytes()
        vmem_limit = int(min(capacity * 3 // 4, 64 * 1024 * 1024))
        budget = int(vmem_limit * 0.8)

        P = N * C
        itemsize = np.dtype(image.dtype).itemsize
        tp = _pick_tp(P, H, W, itemsize, itemsize, budget)

        # Host-side glue: small fixed-shape weight matrices with the crop folded in
        # (only O(H^2 + W^2) host work / host->device transfer per call).
        wh = bicubic_matrix_full(ch, H, H, h_start)                        # (H, H)
        wwt = np.ascontiguousarray(bicubic_matrix_full(cw, W, W, w_start).T)  # (W, W)
        wh_d = jnp.asarray(wh, dtype=jnp.bfloat16)
        wwt_d = jnp.asarray(wwt, dtype=jnp.bfloat16)

        return _crop_resize_device(image, wh_d, wwt_d, tp=tp, vmem_limit=vmem_limit)


if __name__ == "__main__":
    np.random.seed(0)  # deterministic crop geometry (mirrors module's np.random use)
    key = jax.random.PRNGKey(0)
    k1, k2 = jax.random.split(key)

    N, C, H, W = 2, 4, 16, 16
    image = jax.random.normal(k1, (N, C, H, W), dtype=jnp.float32)
    cover = jax.random.normal(k2, (N, C, H, W), dtype=jnp.float32)

    layer = CropResize(lowerbound=0.4, upperbound=0.9)
    out = layer((image, cover))
    jax.block_until_ready(out)
    assert out.shape == (N, C, H, W)

    # Numerical check of the kernel plumbing against the dense separable formula.
    # Kernel runs the MXU in bf16 (per TPU perf guidance), so compare with a tolerance
    # that admits bf16 rounding while still catching any structural error.
    h0, h1, w0, w1 = layer.last_rect
    wh_ref = bicubic_matrix_full(h1 - h0, H, H, h0)
    ww_ref = bicubic_matrix_full(w1 - w0, W, W, w0)
    img_np = np.asarray(image, dtype=np.float32).reshape(N * C, H, W)
    ref = np.einsum('ih,phw,jw->pij', wh_ref, img_np, ww_ref)
    np.testing.assert_allclose(np.asarray(out).reshape(N * C, H, W), ref,
                               rtol=5e-2, atol=1e-1)

    # Second call: new random crop, same shapes -> reuses the cached compilation.
    out2 = layer((image, cover))
    jax.block_until_ready(out2)
    assert out2.shape == (N, C, H, W)

    print("KERNEL_OK")
</pallas_src>

<mosaic_0001>
module attributes {stable_mosaic.version = 11 : i64} {
  func.func @_resize_kernel(%arg0: i32, %arg1: memref<4x16x16xf32, #tpu.memory_space<vmem>>, %arg2: memref<16x16xbf16, #tpu.memory_space<vmem>>, %arg3: memref<16x16xbf16, #tpu.memory_space<vmem>>, %arg4: memref<4x16x16xf32, #tpu.memory_space<vmem>>) attributes {dimension_semantics = [#tpu.dimension_semantics<parallel>], iteration_bounds = array<i64: 2>, scalar_prefetch = 0 : i64, scratch_operands = 0 : i64, tpu.core_type = #tpu.core_type<tc>, window_params = [{transform_indices = @transform_0, window_bounds = array<i64: 4, 16, 16>}, {pipeline_mode = #tpu.pipeline_mode<synchronous>, transform_indices = @transform_1, window_bounds = array<i64: 16, 16>}, {pipeline_mode = #tpu.pipeline_mode<synchronous>, transform_indices = @transform_2, window_bounds = array<i64: 16, 16>}, {transform_indices = @transform_3, window_bounds = array<i64: 4, 16, 16>}]} {
    %c0 = arith.constant 0 : index
    %c0_0 = arith.constant 0 : index
    %c0_1 = arith.constant 0 : index
    %0 = vector.load %arg1[%c0, %c0_0, %c0_1] : memref<4x16x16xf32, #tpu.memory_space<vmem>>, vector<4x16x16xf32>
    %1 = arith.truncf %0 : vector<4x16x16xf32> to vector<4x16x16xbf16>
    %c0_2 = arith.constant 0 : index
    %c0_3 = arith.constant 0 : index
    %2 = vector.load %arg3[%c0_2, %c0_3] : memref<16x16xbf16, #tpu.memory_space<vmem>>, vector<16x16xbf16>
    %3 = vector.shape_cast %2 : vector<16x16xbf16> to vector<1x16x16xbf16>
    %4 = vector.broadcast %3 : vector<1x16x16xbf16> to vector<4x16x16xbf16>
    "tpu.trace_start"() <{level = 10 : i32, message = "phv,pvw->phw"}> : () -> ()
    %cst = arith.constant dense<0.000000e+00> : vector<4x16x16xf32>
    %5 = tpu.matmul %1, %4, %cst {dimension_numbers = #tpu.dot_dimension_numbers<[2], [1], [1], [2], [0, 0, 0, 1, 1, 2], [0], [0]>} : vector<4x16x16xbf16>, vector<4x16x16xbf16>, vector<4x16x16xf32> -> vector<4x16x16xf32>
    "tpu.trace_stop"() : () -> ()
    %6 = arith.truncf %5 : vector<4x16x16xf32> to vector<4x16x16xbf16>
    %c0_4 = arith.constant 0 : index
    %c0_5 = arith.constant 0 : index
    %7 = vector.load %arg2[%c0_4, %c0_5] : memref<16x16xbf16, #tpu.memory_space<vmem>>, vector<16x16xbf16>
    %8 = vector.shape_cast %7 : vector<16x16xbf16> to vector<1x16x16xbf16>
    %9 = vector.broadcast %8 : vector<1x16x16xbf16> to vector<4x16x16xbf16>
    "tpu.trace_start"() <{level = 10 : i32, message = "pik,pkw->piw"}> : () -> ()
    %cst_6 = arith.constant dense<0.000000e+00> : vector<4x16x16xf32>
    %10 = tpu.matmul %9, %6, %cst_6 {dimension_numbers = #tpu.dot_dimension_numbers<[2], [1], [1], [2], [0, 0, 0, 1, 1, 2], [0], [0]>} : vector<4x16x16xbf16>, vector<4x16x16xbf16>, vector<4x16x16xf32> -> vector<4x16x16xf32>
    "tpu.trace_stop"() : () -> ()
    %c0_7 = arith.constant 0 : index
    %c0_8 = arith.constant 0 : index
    %c0_9 = arith.constant 0 : index
    %11 = vector.load %arg4[%c0_7, %c0_8, %c0_9] : memref<4x16x16xf32, #tpu.memory_space<vmem>>, vector<4x16x16xf32>
    tpu.vector_store %arg4[%c0_7, %c0_8, %c0_9], %10 {strides = array<i32>} : memref<4x16x16xf32, #tpu.memory_space<vmem>>, vector<4x16x16xf32>,
    return
  }
  func.func @transform_0(%arg0: i32) -> (i32, i32, i32) {
    %c0_i32 = arith.constant 0 : i32
    %c0_i32_0 = arith.constant 0 : i32
    %c0_i32_1 = arith.constant 0 : i32
    return %arg0, %c0_i32, %c0_i32_0 : i32, i32, i32
  }
  func.func @transform_1(%arg0: i32) -> (i32, i32) {
    %c0_i32 = arith.constant 0 : i32
    %c0_i32_0 = arith.constant 0 : i32
    %c0_i32_1 = arith.constant 0 : i32
    return %c0_i32, %c0_i32_0 : i32, i32
  }
  func.func @transform_2(%arg0: i32) -> (i32, i32) {
    %c0_i32 = arith.constant 0 : i32
    %c0_i32_0 = arith.constant 0 : i32
    %c0_i32_1 = arith.constant 0 : i32
    return %c0_i32, %c0_i32_0 : i32, i32
  }
  func.func @transform_3(%arg0: i32) -> (i32, i32, i32) {
    %c0_i32 = arith.constant 0 : i32
    %c0_i32_0 = arith.constant 0 : i32
    %c0_i32_1 = arith.constant 0 : i32
    return %arg0, %c0_i32, %c0_i32_0 : i32, i32, i32
  }
}

</mosaic_0001>

<llo_original>
// kernel: _crop_resize_device.1
$region0: #{_crop_resize_device.1}
  #allocation0 [shape = 'u32[]', space=smem, size = 0x4, offset = 0x4, fixed_abs, tag = 'smem constant byte address 0x4 - core index']
  #allocation1 [shape = 'u32[144,128]{1,0:T(1,128)}', space=vmem, size = 0x12000, scoped, tag = 'internal scratch']
  %s0 = inlined_call_operand.hbm [shape: f32[8,16,16], index: 0, kind: input, shape index: {}]
  %s1 = inlined_call_operand.hbm [shape: bf16[16,16], index: 1, kind: input, shape index: {}]
  %s2 = inlined_call_operand.vmem [shape: bf16[16,16], index: 2, kind: input, shape index: {}]
  %s3 = inlined_call_operand.hbm [shape: f32[8,16,16], index: 3, kind: output, shape index: {}]
  %s4 = sld [smem:[#allocation0]]
  $region53: #{_crop_resize_device.1} parent=0
    _
  %s6 = ssub.s32 1, %s4
  %s7 = scalar_select 0, %s6, %s4
  $region1: #{_crop_resize_device.1} parent=0
    #allocation2 [shape = 'u8[65536]{0}', space=vmem, size = 0x10000, scoped, tag = 'input window, operand 0']
    #allocation3 [shape = 's32[2]{0}', space=sflag, size = 0x8, scoped, tag = 'scoped memory for _crop_resize_device.1']
    #allocation4 [shape = 's32[2]{0}', space=sflag, size = 0x8, scoped, tag = 'scoped memory for _crop_resize_device.1']
    #allocation5 [shape = 'u8[4096]{0}', space=vmem, size = 0x1000, scoped, tag = 'input window, operand 1, single buffered']
    #allocation6 [shape = 's32[1]{0}', space=sflag, size = 0x4, scoped, tag = 'scoped memory for _crop_resize_device.1']
    #allocation7 [shape = 'u8[65536]{0}', space=vmem, size = 0x10000, scoped, tag = 'output window, operand 0']
    %8 = vsyncpa [#allocation3], 0
    %s9 = scalar_lea.sflag [#allocation3], 1
    %10 = vsyncpa %s9, 0
    %11 = vsyncpa [#allocation6], 0
    %12 = vsyncpa [#allocation4], 0
    %s13 = scalar_lea.sflag [#allocation4], 1
    %14 = vsyncpa %s13, 0
    loop: start=0, step=1, limit=4
    $region2: #{_crop_resize_device.1} parent=1 // loop_pre_header
      _
    $region3: #{_crop_resize_device.1} parent=1 // loop_header
      %s16 = sphi 0, %s20
      %p17 = scmp.ge.s32.totalorder %s16, 4
      %s26 = sphi 0, %s28
      %s29 = sphi 0, %s26
      %s30 = sphi 0, %s29
      %s46 = sphi 0, %s30
      %s50 = sphi 0, %s50
      %s52 = sphi 0, %s50
      %s53 = sphi 0, %s52
      %s67 = sphi 0, %s53
      %s71 = sphi 0, %s71
      %s73 = sphi 0, %s71
      %s74 = sphi 0, %s73
      %s88 = sphi 0, %s74
      %s94 = sphi 0, %s96
      %s97 = sphi 0, %s94
      %s98 = sphi 0, %s97
      %s114 = sphi 0, %s98
    $region4: #{_crop_resize_device.1} parent=1 // loop_header_branch
      %19 = sbr.rel (%p17) target = $region8
    $region5: #{_crop_resize_device.1} parent=1 // loop_body
      %s21 = ssub.s32 %s16, 1
      %s22 = ssub.s32 %s16, 2
      %s23 = sadd.s32 %s16, 1
      %s24 = ssub.s32 %s16, %s23
      %p25 = scmp.eq.s32.totalorder %s24, 0
      %s27 = sadd.s32 %s26, 1
      %s28 = scalar_select %p25, %s26, %s27
      %p31 = pneg %p25
      %p32 = scmp.eq.s32.totalorder %s16, 1
      %p33 = por %p31, %p32
      %p34 = scmp.ne.s32.totalorder %s26, %s29
      %p35 = scmp.eq.s32.totalorder %s16, 0
      %p36 = por %p34, %p35
      %p37 = scmp.ne.s32.totalorder %s26, %s29
      %p38 = scmp.eq.s32.totalorder %s21, 1
      %p39 = por %p37, %p38
      %p40 = scmp.ne.s32.totalorder %s29, %s30
      %p41 = scmp.eq.s32.totalorder %s21, 0
      %p42 = por %p40, %p41
      %p43 = scmp.ne.s32.totalorder %s29, %s30
      %p44 = scmp.eq.s32.totalorder %s22, 1
      %p45 = por %p43, %p44
      %p47 = scmp.ne.s32.totalorder %s30, %s46
      %p48 = scmp.eq.s32.totalorder %s22, 0
      %p49 = por %p47, %p48
      %s51 = sadd.s32 %s50, 1
      %p54 = scmp.eq.s32.totalorder %s16, 1
      %p55 = scmp.ne.s32.totalorder %s50, %s52
      %p56 = scmp.eq.s32.totalorder %s16, 0
      %p57 = por %p55, %p56
      %p58 = scmp.ne.s32.totalorder %s50, %s52
      %p59 = scmp.eq.s32.totalorder %s21, 1
      %p60 = por %p58, %p59
      %p61 = scmp.ne.s32.totalorder %s52, %s53
      %p62 = scmp.eq.s32.totalorder %s21, 0
      %p63 = por %p61, %p62
      %p64 = scmp.ne.s32.totalorder %s52, %s53
      %p65 = scmp.eq.s32.totalorder %s22, 1
      %p66 = por %p64, %p65
      %p68 = scmp.ne.s32.totalorder %s53, %s67
      %p69 = scmp.eq.s32.totalorder %s22, 0
      %p70 = por %p68, %p69
      %s72 = sadd.s32 %s71, 1
      %p75 = scmp.eq.s32.totalorder %s16, 1
      %p76 = scmp.ne.s32.totalorder %s71, %s73
      %p77 = scmp.eq.s32.totalorder %s16, 0
      %p78 = por %p76, %p77
      %p79 = scmp.ne.s32.totalorder %s71, %s73
      %p80 = scmp.eq.s32.totalorder %s21, 1
      %p81 = por %p79, %p80
      %p82 = scmp.ne.s32.totalorder %s73, %s74
      %p83 = scmp.eq.s32.totalorder %s21, 0
      %p84 = por %p82, %p83
      %p85 = scmp.ne.s32.totalorder %s73, %s74
      %p86 = scmp.eq.s32.totalorder %s22, 1
      %p87 = por %p85, %p86
      %p89 = scmp.ne.s32.totalorder %s74, %s88
      %p90 = scmp.eq.s32.totalorder %s22, 0
      %p91 = por %p89, %p90
      %s92 = ssub.s32 %s16, %s23
      %p93 = scmp.eq.s32.totalorder %s92, 0
      %s95 = sadd.s32 %s94, 1
      %s96 = scalar_select %p93, %s94, %s95
      %p99 = pneg %p93
      %p100 = scmp.eq.s32.totalorder %s16, 1
      %p101 = por %p99, %p100
      %p102 = scmp.ne.s32.totalorder %s94, %s97
      %p103 = scmp.eq.s32.totalorder %s16, 0
      %p104 = por %p102, %p103
      %p105 = scmp.ne.s32.totalorder %s94, %s97
      %p106 = scmp.eq.s32.totalorder %s21, 1
      %p107 = por %p105, %p106
      %p108 = scmp.ne.s32.totalorder %s97, %s98
      %p109 = scmp.eq.s32.totalorder %s21, 0
      %p110 = por %p108, %p109
      %p111 = scmp.ne.s32.totalorder %s97, %s98
      %p112 = scmp.eq.s32.totalorder %s22, 1
      %p113 = por %p111, %p112
      %p115 = scmp.ne.s32.totalorder %s98, %s114
      %p116 = scmp.eq.s32.totalorder %s22, 0
      %p117 = por %p115, %p116
      %p118 = scmp.le.s32.totalorder 1, %s16
      %p119 = scmp.lt.s32.totalorder %s16, 3
      %p120 = pnand %p118, %p119
      %p121 = pneg %p120
      // Predicated region
      $region9: #{_crop_resize_device.1} parent=5 // pred_check
        _
      $region10: #{_crop_resize_device.1} parent=5 // pred_check_branch
        %123 = sbr.rel (%p120) target = $region12
      $region11: #{_crop_resize_device.1} parent=5 // pred_region
        %s124 = ssub.s32 %s16, 1
        // Predicated region
        $region13: #{_crop_resize_device.1} parent=11 // pred_check
          %p125 = pneg %p63
        $region14: #{_crop_resize_device.1} parent=11 // pred_check_branch
          %127 = sbr.rel (%p125) target = $region16
        $region15: #{_crop_resize_device.1} parent=11 // pred_region
          %s129 = ssub.s32 128, 128
          %130 = vsyncadd [#allocation6], %s129
          %s131 = sshll.u32 [#allocation5], 4
          %s132 = int_to_ptr.vmem [resolvable:$true] %s131
          %137 = dma.hbm_to_vmem [thread:$0]  %s1, 128, %s132, [#allocation6], 64, 64, 4
        $region16: #{_crop_resize_device.1} parent=11 // pred_fallthru
          _
        // Predicated region
        $region17: #{_crop_resize_device.1} parent=11 // pred_check
          %p138 = pneg %p84
        $region18: #{_crop_resize_device.1} parent=11 // pred_check_branch
          %140 = sbr.rel (%p138) target = $region20
        $region19: #{_crop_resize_device.1} parent=11 // pred_region
          _
        $region20: #{_crop_resize_device.1} parent=11 // pred_fallthru
          _
      $region12: #{_crop_resize_device.1} parent=5 // pred_fallthru
        _
      %p141 = scmp.lt.s32.totalorder %s16, 2
      // Predicated region
      $region21: #{_crop_resize_device.1} parent=5 // pred_check
        %p142 = pneg %p141
      $region22: #{_crop_resize_device.1} parent=5 // pred_check_branch
        %144 = sbr.rel (%p142) target = $region24
      $region23: #{_crop_resize_device.1} parent=5 // pred_region
        // Predicated region
        $region25: #{_crop_resize_device.1} parent=23 // pred_check
          %p145 = pneg %p36
        $region26: #{_crop_resize_device.1} parent=23 // pred_check_branch
          %147 = sbr.rel (%p145) target = $region28
        $region27: #{_crop_resize_device.1} parent=23 // pred_region
          %s148 = sand.u32 %s26, 1
          %s149 = scalar_lea.sflag [#allocation3], %s148
          %s150 = sand.u32 %s26, 1
          %s151 = smul.addr %s150, 64
          %s152 = scalar_lea.vmem [#allocation2], %s151
          %s153 = smul.u32 4, %s16
          %s155 = ssub.s32 1024, 1024
          %156 = vsyncadd %s149, %s155
          %s157 = smul.addr %s153, 2
          %s158 = smul.addr %s157, 128
          %s159 = scalar_lea.hbm %s0, %s158
          %s160 = sshll.u32 %s152, 4
          %s161 = int_to_ptr.vmem [resolvable:$true] %s160
          %166 = dma.hbm_to_vmem [thread:$0]  %s159, 1024, %s161, %s149, 128, 128, 8
        $region28: #{_crop_resize_device.1} parent=23 // pred_fallthru
          _
      $region24: #{_crop_resize_device.1} parent=5 // pred_fallthru
        _
      %p167 = scmp.le.s32.totalorder 1, %s16
      %p168 = scmp.lt.s32.totalorder %s16, 3
      %p169 = pnand %p167, %p168
      %p170 = pneg %p169
      // Predicated region
      $region29: #{_crop_resize_device.1} parent=5 // pred_check
        _
      $region30: #{_crop_resize_device.1} parent=5 // pred_check_branch
        %172 = sbr.rel (%p169) target = $region32
      $region31: #{_crop_resize_device.1} parent=5 // pred_region
        %s173 = ssub.s32 %s16, 1
        %s174 = sand.u32 %s29, 1
        %s175 = scalar_lea.sflag [#allocation3], %s174
        %s176 = sand.u32 %s29, 1
        %s177 = smul.addr %s176, 64
        %s178 = scalar_lea.vmem [#allocation2], %s177
        // Predicated region
        $region33: #{_crop_resize_device.1} parent=31 // pred_check
          %p179 = pneg %p42
        $region34: #{_crop_resize_device.1} parent=31 // pred_check_branch
          %181 = sbr.rel (%p179) target = $region36
        $region35: #{_crop_resize_device.1} parent=31 // pred_region
          %182 = dma.done %s175, 1024
        $region36: #{_crop_resize_device.1} parent=31 // pred_fallthru
          _
        // Predicated region
        $region37: #{_crop_resize_device.1} parent=31 // pred_check
          %p183 = pneg %p63
        $region38: #{_crop_resize_device.1} parent=31 // pred_check_branch
          %185 = sbr.rel (%p183) target = $region40
        $region39: #{_crop_resize_device.1} parent=31 // pred_region
          %186 = dma.done [#allocation6], 128
        $region40: #{_crop_resize_device.1} parent=31 // pred_fallthru
          _
        %s187 = sand.u32 %s29, 1
        %s188 = scalar_lea.sflag [#allocation3], %s187
        %s189 = sand.u32 %s29, 1
        %s190 = smul.addr %s189, 64
        %s191 = scalar_lea.vmem [#allocation2], %s190
        %p192 = pneg %p42
        %p193 = pneg %p39
        %p194 = pneg %p63
        %p195 = pneg %p60
        %p196 = pneg %p84
        %p197 = pneg %p81
        %p198 = pneg %p110
        %p199 = pneg %p107
        %s200 = sand.u32 %s97, 1
        %s201 = scalar_lea.sflag [#allocation4], %s200
        %s202 = sand.u32 %s97, 1
        %s203 = smul.addr %s202, 64
        %s204 = scalar_lea.vmem [#allocation7], %s203
        %s205 = smul.u32 4, %s21
        %s206 = smul.u32 4, %s21
        %v208 = vld [vmem:[%s178] sm:$0xff]
        %v209 = vld [vmem:[%s178 + $0x8] sm:$0xff]
        %v210 = vld [vmem:[%s178 + $0x10] sm:$0xff]
        %v211 = vld [vmem:[%s178 + $0x18] sm:$0xff]
        %v212 = vld [vmem:[%s178 + $0x20] sm:$0xff]
        %v213 = vld [vmem:[%s178 + $0x28] sm:$0xff]
        %v214 = vld [vmem:[%s178 + $0x30] sm:$0xff]
        %v215 = vld [vmem:[%s178 + $0x38] sm:$0xff]
        %v216 = vpack.c.bf16 %v209, %v208
        %v217 = vpack.c.bf16 %v211, %v210
        %v218 = vpack.c.bf16 %v213, %v212
        %v219 = vpack.c.bf16 %v215, %v214
        %v220 = vld [vmem:[%s2] sm:$0xf]
        %v221 = vld [vmem:[%s2 + $0x4] sm:$0xf]
        %v224 = vunpack.c.l.b16 %v220
        %v225 = vunpack.c.l.b16 %v221
        %v226 = vpack.c.b16 %v225, %v224
        %vm228 = vcmask 130048
        %v230 = vsel %vm228, %v216, 0
        %232 = vmatprep.subr.bf16.mxu0 0
        %233 = vmatpush1.bf16.msra.mxu0 %v226
        %234 = vmatprep.subr.bf16.mxu0 0
        %235 = vmatpush1.bf16.msra.mxu0 0
        %236 = vmatprep.subr.bf16.mxu0 0
        %237 = vmatpush1.bf16.msra.mxu0 0
        %238 = vmatprep.subr.bf16.mxu0 0
        %239 = vmatpush1.bf16.msra.mxu0 0
        %240 = vmatprep.subr.bf16.mxu0 0
        %241 = vmatpush1.bf16.msra.mxu0 0
        %242 = vmatprep.subr.bf16.mxu0 0
        %243 = vmatpush1.bf16.msra.mxu0 0
        %244 = vmatprep.subr.bf16.mxu0 0
        %245 = vmatpush1.bf16.msra.mxu0 0
        %246 = vmatprep.subr.bf16.mxu0 0
        %247 = vmatpush1.bf16.msra.mxu0 0
        %248 = vmatprep.subr.bf16.mxu0 0
        %249 = vmatpush1.bf16.msra.mxu0 0
        %250 = vmatprep.subr.bf16.mxu0 0
        %251 = vmatpush1.bf16.msra.mxu0 0
        %252 = vmatprep.subr.bf16.mxu0 0
        %253 = vmatpush1.bf16.msra.mxu0 0
        %254 = vmatprep.subr.bf16.mxu0 0
        %255 = vmatpush1.bf16.msra.mxu0 0
        %256 = vmatprep.subr.bf16.mxu0 0
        %257 = vmatpush1.bf16.msra.mxu0 0
        %258 = vmatprep.subr.bf16.mxu0 0
        %259 = vmatpush1.bf16.msra.mxu0 0
        %260 = vmatprep.subr.bf16.mxu0 0
        %261 = vmatpush1.bf16.msra.mxu0 0
        %262 = vmatprep.subr.bf16.mxu0 0
        %263 = vmatpush1.bf16.msra.mxu0 0
        %264 = vmatprep.mubr.bf16.mxu0 0
        %265 = vmatmul.mubr.bf16.gmra.mrb[0].mxu0 %v230
        %v266 = vpop.f32.mrb[0].mxu0
        %v267 = vadd.f32 0.0, %v266
        %v268 = vpop.f32.mrb[0].mxu0
        %v269 = vpop.f32.mrb[0].mxu0
        %v270 = vadd.f32 0.0, %v269
        %v271 = vpop.f32.mrb[0].mxu0
        %272 = vdwg.mxu0
        %v274 = vsel %vm228, %v217, 0
        %276 = vmatprep.subr.bf16.mxu0 0
        %277 = vmatpush1.bf16.msra.mxu0 %v226
        %278 = vmatprep.subr.bf16.mxu0 0
        %279 = vmatpush1.bf16.msra.mxu0 0
        %280 = vmatprep.subr.bf16.mxu0 0
        %281 = vmatpush1.bf16.msra.mxu0 0
        %282 = vmatprep.subr.bf16.mxu0 0
        %283 = vmatpush1.bf16.msra.mxu0 0
        %284 = vmatprep.subr.bf16.mxu0 0
        %285 = vmatpush1.bf16.msra.mxu0 0
        %286 = vmatprep.subr.bf16.mxu0 0
        %287 = vmatpush1.bf16.msra.mxu0 0
        %288 = vmatprep.subr.bf16.mxu0 0
        %289 = vmatpush1.bf16.msra.mxu0 0
        %290 = vmatprep.subr.bf16.mxu0 0
        %291 = vmatpush1.bf16.msra.mxu0 0
        %292 = vmatprep.subr.bf16.mxu0 0
        %293 = vmatpush1.bf16.msra.mxu0 0
        %294 = vmatprep.subr.bf16.mxu0 0
        %295 = vmatpush1.bf16.msra.mxu0 0
        %296 = vmatprep.subr.bf16.mxu0 0
        %297 = vmatpush1.bf16.msra.mxu0 0
        %298 = vmatprep.subr.bf16.mxu0 0
        %299 = vmatpush1.bf16.msra.mxu0 0
        %300 = vmatprep.subr.bf16.mxu0 0
        %301 = vmatpush1.bf16.msra.mxu0 0
        %302 = vmatprep.subr.bf16.mxu0 0
        %303 = vmatpush1.bf16.msra.mxu0 0
        %304 = vmatprep.subr.bf16.mxu0 0
        %305 = vmatpush1.bf16.msra.mxu0 0
        %306 = vmatprep.subr.bf16.mxu0 0
        %307 = vmatpush1.bf16.msra.mxu0 0
        %308 = vmatprep.mubr.bf16.mxu0 0
        %309 = vmatmul.mubr.bf16.gmra.mrb[0].mxu0 %v274
        %v310 = vpop.f32.mrb[0].mxu0
        %v311 = vadd.f32 0.0, %v310
        %v312 = vpop.f32.mrb[0].mxu0
        %v313 = vpop.f32.mrb[0].mxu0
        %v314 = vadd.f32 0.0, %v313
        %v315 = vpop.f32.mrb[0].mxu0
        %316 = vdwg.mxu0
        %v318 = vsel %vm228, %v218, 0
        %320 = vmatprep.subr.bf16.mxu0 0
        %321 = vmatpush1.bf16.msra.mxu0 %v226
        %322 = vmatprep.subr.bf16.mxu0 0
        %323 = vmatpush1.bf16.msra.mxu0 0
        %324 = vmatprep.subr.bf16.mxu0 0
        %325 = vmatpush1.bf16.msra.mxu0 0
        %326 = vmatprep.subr.bf16.mxu0 0
        %327 = vmatpush1.bf16.msra.mxu0 0
        %328 = vmatprep.subr.bf16.mxu0 0
        %329 = vmatpush1.bf16.msra.mxu0 0
        %330 = vmatprep.subr.bf16.mxu0 0
        %331 = vmatpush1.bf16.msra.mxu0 0
        %332 = vmatprep.subr.bf16.mxu0 0
        %333 = vmatpush1.bf16.msra.mxu0 0
        %334 = vmatprep.subr.bf16.mxu0 0
        %335 = vmatpush1.bf16.msra.mxu0 0
        %336 = vmatprep.subr.bf16.mxu0 0
        %337 = vmatpush1.bf16.msra.mxu0 0
        %338 = vmatprep.subr.bf16.mxu0 0
        %339 = vmatpush1.bf16.msra.mxu0 0
        %340 = vmatprep.subr.bf16.mxu0 0
        %341 = vmatpush1.bf16.msra.mxu0 0
        %342 = vmatprep.subr.bf16.mxu0 0
        %343 = vmatpush1.bf16.msra.mxu0 0
        %344 = vmatprep.subr.bf16.mxu0 0
        %345 = vmatpush1.bf16.msra.mxu0 0
        %346 = vmatprep.subr.bf16.mxu0 0
        %347 = vmatpush1.bf16.msra.mxu0 0
        %348 = vmatprep.subr.bf16.mxu0 0
        %349 = vmatpush1.bf16.msra.mxu0 0
        %350 = vmatprep.subr.bf16.mxu0 0
        %351 = vmatpush1.bf16.msra.mxu0 0
        %352 = vmatprep.mubr.bf16.mxu0 0
        %353 = vmatmul.mubr.bf16.gmra.mrb[0].mxu0 %v318
        %v354 = vpop.f32.mrb[0].mxu0
        %v355 = vadd.f32 0.0, %v354
        %v356 = vpop.f32.mrb[0].mxu0
        %v357 = vpop.f32.mrb[0].mxu0
        %v358 = vadd.f32 0.0, %v357
        %v359 = vpop.f32.mrb[0].mxu0
        %360 = vdwg.mxu0
        %v362 = vsel %vm228, %v219, 0
        %364 = vmatprep.subr.bf16.mxu0 0
        %365 = vmatpush1.bf16.msra.mxu0 %v226
        %366 = vmatprep.subr.bf16.mxu0 0
        %367 = vmatpush1.bf16.msra.mxu0 0
        %368 = vmatprep.subr.bf16.mxu0 0
        %369 = vmatpush1.bf16.msra.mxu0 0
        %370 = vmatprep.subr.bf16.mxu0 0
        %371 = vmatpush1.bf16.msra.mxu0 0
        %372 = vmatprep.subr.bf16.mxu0 0
        %373 = vmatpush1.bf16.msra.mxu0 0
        %374 = vmatprep.subr.bf16.mxu0 0
        %375 = vmatpush1.bf16.msra.mxu0 0
        %376 = vmatprep.subr.bf16.mxu0 0
        %377 = vmatpush1.bf16.msra.mxu0 0
        %378 = vmatprep.subr.bf16.mxu0 0
        %379 = vmatpush1.bf16.msra.mxu0 0
        %380 = vmatprep.subr.bf16.mxu0 0
        %381 = vmatpush1.bf16.msra.mxu0 0
        %382 = vmatprep.subr.bf16.mxu0 0
        %383 = vmatpush1.bf16.msra.mxu0 0
        %384 = vmatprep.subr.bf16.mxu0 0
        %385 = vmatpush1.bf16.msra.mxu0 0
        %386 = vmatprep.subr.bf16.mxu0 0
        %387 = vmatpush1.bf16.msra.mxu0 0
        %388 = vmatprep.subr.bf16.mxu0 0
        %389 = vmatpush1.bf16.msra.mxu0 0
        %390 = vmatprep.subr.bf16.mxu0 0
        %391 = vmatpush1.bf16.msra.mxu0 0
        %392 = vmatprep.subr.bf16.mxu0 0
        %393 = vmatpush1.bf16.msra.mxu0 0
        %394 = vmatprep.subr.bf16.mxu0 0
        %395 = vmatpush1.bf16.msra.mxu0 0
        %396 = vmatprep.mubr.bf16.mxu0 0
        %397 = vmatmul.mubr.bf16.gmra.mrb[0].mxu0 %v362
        %v398 = vpop.f32.mrb[0].mxu0
        %v399 = vadd.f32 0.0, %v398
        %v400 = vpop.f32.mrb[0].mxu0
        %v401 = vpop.f32.mrb[0].mxu0
        %v402 = vadd.f32 0.0, %v401
        %v403 = vpop.f32.mrb[0].mxu0
        %404 = vdwg.mxu0
        %v405 = vpack.c.bf16 %v270, %v267
        %v406 = vpack.c.bf16 %v314, %v311
        %v407 = vpack.c.bf16 %v358, %v355
        %v408 = vpack.c.bf16 %v402, %v399
        %v409 = vld [vmem:[#allocation5] sm:$0xf]
        %v410 = vld [vmem:[#allocation5 + $0x4] sm:$0xf]
        %v413 = vunpack.c.l.b16 %v409
        %v414 = vunpack.c.l.b16 %v410
        %v415 = vpack.c.b16 %v414, %v413
        %v417 = vsel %vm228, %v415, 0
        %419 = vmatprep.subr.bf16.mxu0 0
        %420 = vmatpush1.bf16.msra.mxu0 %v405
        %421 = vmatprep.subr.bf16.mxu0 0
        %422 = vmatpush1.bf16.msra.mxu0 0
        %423 = vmatprep.subr.bf16.mxu0 0
        %424 = vmatpush1.bf16.msra.mxu0 0
        %425 = vmatprep.subr.bf16.mxu0 0
        %426 = vmatpush1.bf16.msra.mxu0 0
        %427 = vmatprep.subr.bf16.mxu0 0
        %428 = vmatpush1.bf16.msra.mxu0 0
        %429 = vmatprep.subr.bf16.mxu0 0
        %430 = vmatpush1.bf16.msra.mxu0 0
        %431 = vmatprep.subr.bf16.mxu0 0
        %432 = vmatpush1.bf16.msra.mxu0 0
        %433 = vmatprep.subr.bf16.mxu0 0
        %434 = vmatpush1.bf16.msra.mxu0 0
        %435 = vmatprep.subr.bf16.mxu0 0
        %436 = vmatpush1.bf16.msra.mxu0 0
        %437 = vmatprep.subr.bf16.mxu0 0
        %438 = vmatpush1.bf16.msra.mxu0 0
        %439 = vmatprep.subr.bf16.mxu0 0
        %440 = vmatpush1.bf16.msra.mxu0 0
        %441 = vmatprep.subr.bf16.mxu0 0
        %442 = vmatpush1.bf16.msra.mxu0 0
        %443 = vmatprep.subr.bf16.mxu0 0
        %444 = vmatpush1.bf16.msra.mxu0 0
        %445 = vmatprep.subr.bf16.mxu0 0
        %446 = vmatpush1.bf16.msra.mxu0 0
        %447 = vmatprep.subr.bf16.mxu0 0
        %448 = vmatpush1.bf16.msra.mxu0 0
        %449 = vmatprep.subr.bf16.mxu0 0
        %450 = vmatpush1.bf16.msra.mxu0 0
        %451 = vmatprep.mubr.bf16.mxu0 0
        %452 = vmatmul.mubr.bf16.gmra.mrb[0].mxu0 %v417
        %v453 = vpop.f32.mrb[0].mxu0
        %v454 = vadd.f32 0.0, %v453
        %v455 = vpop.f32.mrb[0].mxu0
        %v456 = vpop.f32.mrb[0].mxu0
        %v457 = vadd.f32 0.0, %v456
        %v458 = vpop.f32.mrb[0].mxu0
        %459 = vdwg.mxu0
        %460 = vmatprep.subr.bf16.mxu0 0
        %461 = vmatpush1.bf16.msra.mxu0 %v406
        %462 = vmatprep.subr.bf16.mxu0 0
        %463 = vmatpush1.bf16.msra.mxu0 0
        %464 = vmatprep.subr.bf16.mxu0 0
        %465 = vmatpush1.bf16.msra.mxu0 0
        %466 = vmatprep.subr.bf16.mxu0 0
        %467 = vmatpush1.bf16.msra.mxu0 0
        %468 = vmatprep.subr.bf16.mxu0 0
        %469 = vmatpush1.bf16.msra.mxu0 0
        %470 = vmatprep.subr.bf16.mxu0 0
        %471 = vmatpush1.bf16.msra.mxu0 0
        %472 = vmatprep.subr.bf16.mxu0 0
        %473 = vmatpush1.bf16.msra.mxu0 0
        %474 = vmatprep.subr.bf16.mxu0 0
        %475 = vmatpush1.bf16.msra.mxu0 0
        %476 = vmatprep.subr.bf16.mxu0 0
        %477 = vmatpush1.bf16.msra.mxu0 0
        %478 = vmatprep.subr.bf16.mxu0 0
        %479 = vmatpush1.bf16.msra.mxu0 0
        %480 = vmatprep.subr.bf16.mxu0 0
        %481 = vmatpush1.bf16.msra.mxu0 0
        %482 = vmatprep.subr.bf16.mxu0 0
        %483 = vmatpush1.bf16.msra.mxu0 0
        %484 = vmatprep.subr.bf16.mxu0 0
        %485 = vmatpush1.bf16.msra.mxu0 0
        %486 = vmatprep.subr.bf16.mxu0 0
        %487 = vmatpush1.bf16.msra.mxu0 0
        %488 = vmatprep.subr.bf16.mxu0 0
        %489 = vmatpush1.bf16.msra.mxu0 0
        %490 = vmatprep.subr.bf16.mxu0 0
        %491 = vmatpush1.bf16.msra.mxu0 0
        %492 = vmatprep.mubr.bf16.mxu0 0
        %493 = vmatmul.mubr.bf16.gmra.mrb[0].mxu0 %v417
        %v494 = vpop.f32.mrb[0].mxu0
        %v495 = vadd.f32 0.0, %v494
        %v496 = vpop.f32.mrb[0].mxu0
        %v497 = vpop.f32.mrb[0].mxu0
        %v498 = vadd.f32 0.0, %v497
        %v499 = vpop.f32.mrb[0].mxu0
        %500 = vdwg.mxu0
        %501 = vmatprep.subr.bf16.mxu0 0
        %502 = vmatpush1.bf16.msra.mxu0 %v407
        %503 = vmatprep.subr.bf16.mxu0 0
        %504 = vmatpush1.bf16.msra.mxu0 0
        %505 = vmatprep.subr.bf16.mxu0 0
        %506 = vmatpush1.bf16.msra.mxu0 0
        %507 = vmatprep.subr.bf16.mxu0 0
        %508 = vmatpush1.bf16.msra.mxu0 0
        %509 = vmatprep.subr.bf16.mxu0 0
        %510 = vmatpush1.bf16.msra.mxu0 0
        %511 = vmatprep.subr.bf16.mxu0 0
        %512 = vmatpush1.bf16.msra.mxu0 0
        %513 = vmatprep.subr.bf16.mxu0 0
        %514 = vmatpush1.bf16.msra.mxu0 0
        %515 = vmatprep.subr.bf16.mxu0 0
        %516 = vmatpush1.bf16.msra.mxu0 0
        %517 = vmatprep.subr.bf16.mxu0 0
        %518 = vmatpush1.bf16.msra.mxu0 0
        %519 = vmatprep.subr.bf16.mxu0 0
        %520 = vmatpush1.bf16.msra.mxu0 0
        %521 = vmatprep.subr.bf16.mxu0 0
        %522 = vmatpush1.bf16.msra.mxu0 0
        %523 = vmatprep.subr.bf16.mxu0 0
        %524 = vmatpush1.bf16.msra.mxu0 0
        %525 = vmatprep.subr.bf16.mxu0 0
        %526 = vmatpush1.bf16.msra.mxu0 0
        %527 = vmatprep.subr.bf16.mxu0 0
        %528 = vmatpush1.bf16.msra.mxu0 0
        %529 = vmatprep.subr.bf16.mxu0 0
        %530 = vmatpush1.bf16.msra.mxu0 0
        %531 = vmatprep.subr.bf16.mxu0 0
        %532 = vmatpush1.bf16.msra.mxu0 0
        %533 = vmatprep.mubr.bf16.mxu0 0
        %534 = vmatmul.mubr.bf16.gmra.mrb[0].mxu0 %v417
        %v535 = vpop.f32.mrb[0].mxu0
        %v536 = vadd.f32 0.0, %v535
        %v537 = vpop.f32.mrb[0].mxu0
        %v538 = vpop.f32.mrb[0].mxu0
        %v539 = vadd.f32 0.0, %v538
        %v540 = vpop.f32.mrb[0].mxu0
        %541 = vdwg.mxu0
        %542 = vmatprep.subr.bf16.mxu0 0
        %543 = vmatpush1.bf16.msra.mxu0 %v408
        %544 = vmatprep.subr.bf16.mxu0 0
        %545 = vmatpush1.bf16.msra.mxu0 0
        %546 = vmatprep.subr.bf16.mxu0 0
        %547 = vmatpush1.bf16.msra.mxu0 0
        %548 = vmatprep.subr.bf16.mxu0 0
        %549 = vmatpush1.bf16.msra.mxu0 0
        %550 = vmatprep.subr.bf16.mxu0 0
        %551 = vmatpush1.bf16.msra.mxu0 0
        %552 = vmatprep.subr.bf16.mxu0 0
        %553 = vmatpush1.bf16.msra.mxu0 0
        %554 = vmatprep.subr.bf16.mxu0 0
        %555 = vmatpush1.bf16.msra.mxu0 0
        %556 = vmatprep.subr.bf16.mxu0 0
        %557 = vmatpush1.bf16.msra.mxu0 0
        %558 = vmatprep.subr.bf16.mxu0 0
        %559 = vmatpush1.bf16.msra.mxu0 0
        %560 = vmatprep.subr.bf16.mxu0 0
        %561 = vmatpush1.bf16.msra.mxu0 0
        %562 = vmatprep.subr.bf16.mxu0 0
        %563 = vmatpush1.bf16.msra.mxu0 0
        %564 = vmatprep.subr.bf16.mxu0 0
        %565 = vmatpush1.bf16.msra.mxu0 0
        %566 = vmatprep.subr.bf16.mxu0 0
        %567 = vmatpush1.bf16.msra.mxu0 0
        %568 = vmatprep.subr.bf16.mxu0 0
        %569 = vmatpush1.bf16.msra.mxu0 0
        %570 = vmatprep.subr.bf16.mxu0 0
        %571 = vmatpush1.bf16.msra.mxu0 0
        %572 = vmatprep.subr.bf16.mxu0 0
        %573 = vmatpush1.bf16.msra.mxu0 0
        %574 = vmatprep.mubr.bf16.mxu0 0
        %575 = vmatmul.mubr.bf16.gmra.mrb[0].mxu0 %v417
        %v576 = vpop.f32.mrb[0].mxu0
        %v577 = vadd.f32 0.0, %v576
        %v578 = vpop.f32.mrb[0].mxu0
        %v579 = vpop.f32.mrb[0].mxu0
        %v580 = vadd.f32 0.0, %v579
        %v581 = vpop.f32.mrb[0].mxu0
        %582 = vdwg.mxu0
        %583 = vst.msk [vmem:[%s204] sm:$0xff] %vm228, %v454
        %584 = vst.msk [vmem:[%s204 + $0x8] sm:$0xff] %vm228, %v457
        %585 = vst.msk [vmem:[%s204 + $0x10] sm:$0xff] %vm228, %v495
        %586 = vst.msk [vmem:[%s204 + $0x18] sm:$0xff] %vm228, %v498
        %587 = vst.msk [vmem:[%s204 + $0x20] sm:$0xff] %vm228, %v536
        %588 = vst.msk [vmem:[%s204 + $0x28] sm:$0xff] %vm228, %v539
        %589 = vst.msk [vmem:[%s204 + $0x30] sm:$0xff] %vm228, %v577
        %590 = vst.msk [vmem:[%s204 + $0x38] sm:$0xff] %vm228, %v580
        %s591 = sand.u32 %s97, 1
        %s592 = scalar_lea.sflag [#allocation4], %s591
        %s593 = sand.u32 %s97, 1
        %s594 = smul.addr %s593, 64
        %s595 = scalar_lea.vmem [#allocation7], %s594
        // Predicated region
        $region41: #{_crop_resize_device.1} parent=31 // pred_check
          %p596 = pneg %p107
        $region42: #{_crop_resize_device.1} parent=31 // pred_check_branch
          %598 = sbr.rel (%p596) target = $region44
        $region43: #{_crop_resize_device.1} parent=31 // pred_region
          %s599 = smul.u32 4, %s21
          %s601 = ssub.s32 1024, 1024
          %602 = vsyncadd %s592, %s601
          %s603 = smul.addr %s599, 2
          %s604 = smul.addr %s603, 128
          %s605 = scalar_lea.hbm %s3, %s604
          %s606 = sshll.u32 %s595, 4
          %s607 = int_to_ptr.vmem [resolvable:$true] %s606
          %612 = dma.vmem_to_hbm [thread:$0]  %s607, 1024, %s605, %s592, 128, 128, 8
        $region44: #{_crop_resize_device.1} parent=31 // pred_fallthru
          _
      $region32: #{_crop_resize_device.1} parent=5 // pred_fallthru
        _
      %p613 = scmp.le.s32.totalorder 2, %s16
      // Predicated region
      $region45: #{_crop_resize_device.1} parent=5 // pred_check
        %p614 = pneg %p613
      $region46: #{_crop_resize_device.1} parent=5 // pred_check_branch
        %616 = sbr.rel (%p614) target = $region48
      $region47: #{_crop_resize_device.1} parent=5 // pred_region
        %s617 = ssub.s32 %s16, 2
        // Predicated region
        $region49: #{_crop_resize_device.1} parent=47 // pred_check
          %p618 = pneg %p113
        $region50: #{_crop_resize_device.1} parent=47 // pred_check_branch
          %620 = sbr.rel (%p618) target = $region52
        $region51: #{_crop_resize_device.1} parent=47 // pred_region
          %s621 = sand.u32 %s98, 1
          %s622 = scalar_lea.sflag [#allocation4], %s621
          %s623 = sand.u32 %s98, 1
          %s624 = smul.addr %s623, 64
          %s625 = scalar_lea.vmem [#allocation7], %s624
          %626 = dma.done %s622, 1024
        $region52: #{_crop_resize_device.1} parent=47 // pred_fallthru
          _
      $region48: #{_crop_resize_device.1} parent=5 // pred_fallthru
        _
    $region6: #{_crop_resize_device.1} parent=1 // loop_footer
      %s20 = sadd.s32 1, %s16
    $region7: #{_crop_resize_device.1} parent=1 // loop_footer_branch
      %15 = sbr.rel target = $region3
    $region8: #{_crop_resize_device.1} parent=1 // loop_exit
      _
    %627 = vsyncpa [#allocation3], 1
    %s628 = scalar_lea.sflag [#allocation3], 1
    %629 = vsyncpa %s628, 1
    %630 = vsyncpa [#allocation6], 1
    %631 = vsyncpa [#allocation4], 1
    %s632 = scalar_lea.sflag [#allocation4], 1
    %633 = vsyncpa %s632, 1

</llo_original>
